<compile_context>
chip_gen: v6e
topology: v6e:2x2x1
jax: 0.10.0
libtpu: 0.0.40
codegen_flags: <defaults>
</compile_context>

<pallas_src>
import jax
import jax.numpy as jnp
from jax.experimental import pallas as pl
from jax.experimental.pallas import tpu as pltpu


def _normalize_kernel(scale_ref, bias_ref, x_ref, o_ref):
    # scale_ref / bias_ref: VMEM (BR, 1) float32; x_ref / o_ref: VMEM (BR, BC).
    # Affine computed in f32 (VPU mul+add rides in idle slots; kernel is
    # HBM-bound), cast only on the output store.
    x = x_ref[...].astype(jnp.float32)
    o_ref[...] = (x * scale_ref[...] + bias_ref[...]).astype(o_ref.dtype)


def _largest_dividing_multiple(n, unit, cap):
    """Largest multiple of `unit` that divides n and is <= cap (0 if none)."""
    c = cap - (cap % unit)
    while c >= unit:
        if n % c == 0:
            return c
        c -= unit
    return 0


def _choose_tiles(R, L, itemsize):
    """Pick (BR, BC) for the (R, L) lane-dense view.  Grows BC before BR."""
    LANE = 128
    # dtype-aware sublane packing: f32 -> 8, bf16/f16 -> 16, int8/fp8 -> 32.
    sub = {4: 8, 2: 16, 1: 32}.get(itemsize, 8)
    budget = 4 * 1024 * 1024  # bytes per x block (x4 for in+out double buffer)

    # ---- lane (last) dim first ----
    max_bc = max(LANE, budget // (sub * itemsize))
    if L <= max_bc:
        BC = L  # full lane dim is always a legal block extent
    elif L % LANE == 0:
        BC = _largest_dividing_multiple(L, LANE, max_bc)
        if BC == 0:  # unreachable when L % 128 == 0, defensive
            BC = max_bc - (max_bc % LANE)
    else:
        # Ragged lane dim with no clean divisor: cap at a multiple of 128 and
        # let the cdiv grid mask the tail block (keeps stores full-width for
        # all but the last column block, and keeps the block inside budget).
        BC = max(LANE, max_bc - (max_bc % LANE))

    # ---- sublane (row) dim with the remaining budget ----
    max_br = max(sub, (budget // max(1, BC * itemsize)) // sub * sub)
    if R <= max_br:
        BR = R  # full row dim is always legal (covers R < sub too)
    else:
        BR = _largest_dividing_multiple(R, sub, max_br)
        if BR == 0:
            BR = max_br  # masked row tail via cdiv grid

    # ---- v7x (2 TensorCores): avoid a degenerate single-iteration grid for
    # arrays big enough that sharding matters. ----
    gi, gj = pl.cdiv(R, BR), pl.cdiv(L, BC)
    if gi * gj == 1 and R * L * itemsize >= (1 << 20) and R >= 2 * sub:
        half = (R + 1) // 2
        BR = max(sub, (half + sub - 1) // sub * sub)

    return BR, BC


class Normalize:
    """Pallas-backed equivalent of the PyTorch Normalize module."""

    def __init__(self, mean, std):
        mean = jnp.asarray(mean, dtype=jnp.float32).reshape(-1)
        std = jnp.asarray(std, dtype=jnp.float32).reshape(-1)
        # Hoisted out of the per-call path: per-channel affine, kept in f32.
        self._scale_c = 1.0 / std          # (C,) or (1,)
        self._bias_c = -mean / std         # (C,) or (1,)
        self._fwd = jax.jit(self._forward)

    def __call__(self, x):
        return self._fwd(x)

    def _forward(self, x):
        N, C, H, W = x.shape
        R = N * C          # rows (sublane axis)
        L = H * W          # lanes (fast axis)
        itemsize = jnp.dtype(x.dtype).itemsize

        # Per-row (N*C, 1) f32 column vectors aligned with the flattening
        # (row r -> channel r % C).  One broadcast + reshape, traced once.
        scale_c = jnp.broadcast_to(self._scale_c, (C,))
        bias_c = jnp.broadcast_to(self._bias_c, (C,))
        scale_r = jnp.broadcast_to(scale_c[None, :], (N, C)).reshape(R, 1)
        bias_r = jnp.broadcast_to(bias_c[None, :], (N, C)).reshape(R, 1)

        x2 = x.reshape(R, L)

        BR, BC = _choose_tiles(R, L, itemsize)
        grid = (pl.cdiv(R, BR), pl.cdiv(L, BC))

        # VMEM footprint: 2 buffers x (x block + out block + scale + bias).
        block_bytes = BR * BC * itemsize
        footprint = 2 * (2 * block_bytes + 2 * BR * 4)
        vmem_limit = min(100 * 1024 * 1024, max(16 * 1024 * 1024,
                                                footprint + 8 * 1024 * 1024))

        cost = pl.CostEstimate(
            flops=2 * R * L,
            transcendentals=0,
            bytes_accessed=2 * R * L * itemsize + 2 * R * 4,
        )

        out2 = pl.pallas_call(
            _normalize_kernel,
            out_shape=jax.ShapeDtypeStruct((R, L), x.dtype),
            grid=grid,
            in_specs=[
                pl.BlockSpec((BR, 1), lambda i, j: (i, 0)),    # scale (f32)
                pl.BlockSpec((BR, 1), lambda i, j: (i, 0)),    # bias  (f32)
                pl.BlockSpec((BR, BC), lambda i, j: (i, j)),   # x tile
            ],
            out_specs=pl.BlockSpec((BR, BC), lambda i, j: (i, j)),
            compiler_params=pltpu.CompilerParams(
                dimension_semantics=("parallel", "parallel"),
                vmem_limit_bytes=vmem_limit,
            ),
            cost_estimate=cost,
        )(scale_r, bias_r, x2)

        return out2.reshape(N, C, H, W)


def normalize(x, mean, std):
    """Functional convenience wrapper (builds the affine each call)."""
    return Normalize(mean, std)(x)


if __name__ == "__main__":
    key = jax.random.PRNGKey(0)
    N, C, H, W = 2, 4, 16, 16

    x = jax.random.normal(key, (N, C, H, W), dtype=jnp.float32)
    # Deterministic per-channel stats (ImageNet-style), shaped like the torch
    # module would hold them for NCHW broadcasting.
    mean = jnp.array([0.485, 0.456, 0.406, 0.5][:C], dtype=jnp.float32).reshape(1, C, 1, 1)
    std = jnp.array([0.229, 0.224, 0.225, 0.25][:C], dtype=jnp.float32).reshape(1, C, 1, 1)

    norm = Normalize(mean, std)
    out = norm(x)
    out = jax.block_until_ready(out)

    # Reference check in plain JAX (same broadcasting as PyTorch forward).
    ref = (x - mean) / std
    assert jnp.allclose(out, ref, atol=1e-5, rtol=1e-6), "mismatch vs reference"

    print("KERNEL_OK")
</pallas_src>

<mosaic_0001>
module attributes {stable_mosaic.version = 11 : i64} {
  func.func @_normalize_kernel(%arg0: i32, %arg1: i32, %arg2: memref<8x1xf32, #tpu.memory_space<vmem>>, %arg3: memref<8x1xf32, #tpu.memory_space<vmem>>, %arg4: memref<8x256xf32, #tpu.memory_space<vmem>>, %arg5: memref<8x256xf32, #tpu.memory_space<vmem>>) attributes {dimension_semantics = [#tpu.dimension_semantics<parallel>, #tpu.dimension_semantics<parallel>], iteration_bounds = array<i64: 1, 1>, scalar_prefetch = 0 : i64, scratch_operands = 0 : i64, tpu.core_type = #tpu.core_type<tc>, window_params = [{transform_indices = @transform_0, window_bounds = array<i64: 8, 1>}, {transform_indices = @transform_1, window_bounds = array<i64: 8, 1>}, {transform_indices = @transform_2, window_bounds = array<i64: 8, 256>}, {transform_indices = @transform_3, window_bounds = array<i64: 8, 256>}]} {
    %c0 = arith.constant 0 : index
    %c0_0 = arith.constant 0 : index
    %0 = vector.load %arg4[%c0, %c0_0] : memref<8x256xf32, #tpu.memory_space<vmem>>, vector<8x256xf32>
    %c0_1 = arith.constant 0 : index
    %c0_2 = arith.constant 0 : index
    %1 = vector.load %arg2[%c0_1, %c0_2] : memref<8x1xf32, #tpu.memory_space<vmem>>, vector<8x1xf32>
    %2 = vector.broadcast %1 : vector<8x1xf32> to vector<8x256xf32>
    %3 = arith.mulf %0, %2 : vector<8x256xf32>
    %c0_3 = arith.constant 0 : index
    %c0_4 = arith.constant 0 : index
    %4 = vector.load %arg3[%c0_3, %c0_4] : memref<8x1xf32, #tpu.memory_space<vmem>>, vector<8x1xf32>
    %5 = vector.broadcast %4 : vector<8x1xf32> to vector<8x256xf32>
    %6 = arith.addf %3, %5 : vector<8x256xf32>
    %c0_5 = arith.constant 0 : index
    %c0_6 = arith.constant 0 : index
    %7 = vector.load %arg5[%c0_5, %c0_6] : memref<8x256xf32, #tpu.memory_space<vmem>>, vector<8x256xf32>
    tpu.vector_store %arg5[%c0_5, %c0_6], %6 {strides = array<i32>} : memref<8x256xf32, #tpu.memory_space<vmem>>, vector<8x256xf32>,
    return
  }
  func.func @transform_0(%arg0: i32, %arg1: i32) -> (i32, i32) {
    %c0_i32 = arith.constant 0 : i32
    %c0_i32_0 = arith.constant 0 : i32
    return %arg0, %c0_i32 : i32, i32
  }
  func.func @transform_1(%arg0: i32, %arg1: i32) -> (i32, i32) {
    %c0_i32 = arith.constant 0 : i32
    %c0_i32_0 = arith.constant 0 : i32
    return %arg0, %c0_i32 : i32, i32
  }
  func.func @transform_2(%arg0: i32, %arg1: i32) -> (i32, i32) {
    %c0_i32 = arith.constant 0 : i32
    return %arg0, %arg1 : i32, i32
  }
  func.func @transform_3(%arg0: i32, %arg1: i32) -> (i32, i32) {
    %c0_i32 = arith.constant 0 : i32
    return %arg0, %arg1 : i32, i32
  }
}

</mosaic_0001>

<llo_original>
// kernel: _forward.1
$region0: #{_forward.1}
  #allocation0 [shape = 'u32[]', space=smem, size = 0x4, offset = 0x4, fixed_abs, tag = 'smem constant byte address 0x4 - core index']
  #allocation1 [shape = 'u32[144,128]{1,0:T(1,128)}', space=vmem, size = 0x12000, scoped, tag = 'internal scratch']
  %s0 = inlined_call_operand.vmem [shape: f32[8,1], index: 0, kind: input, shape index: {}]
  %s1 = inlined_call_operand.vmem [shape: f32[8,1], index: 1, kind: input, shape index: {}]
  %s2 = inlined_call_operand.vmem [shape: f32[8,256], index: 2, kind: input, shape index: {}]
  %s3 = inlined_call_operand.vmem [shape: f32[8,256], index: 3, kind: output, shape index: {}]
  %s4 = sld [smem:[#allocation0]]
  $region22: #{_forward.1} parent=0
    _
  %s6 = ssub.s32 1, %s4
  %s7 = scalar_select 0, %s6, %s4
  // Predicated region
  $region2: #{_forward.1} parent=0 // pred_check
    _
  $region3: #{_forward.1} parent=0 // pred_check_branch
    %9 = sbr.rel (0) target = $region5
  $region4: #{_forward.1} parent=0 // pred_region
    _
  $region5: #{_forward.1} parent=0 // pred_fallthru
    _
  // Predicated region
  $region6: #{_forward.1} parent=0 // pred_check
    _
  $region7: #{_forward.1} parent=0 // pred_check_branch
    %11 = sbr.rel (0) target = $region9
  $region8: #{_forward.1} parent=0 // pred_region
    _
  $region9: #{_forward.1} parent=0 // pred_fallthru
    _
  // Predicated region
  $region10: #{_forward.1} parent=0 // pred_check
    _
  $region11: #{_forward.1} parent=0 // pred_check_branch
    %13 = sbr.rel (0) target = $region13
  $region12: #{_forward.1} parent=0 // pred_region
    _
  $region13: #{_forward.1} parent=0 // pred_fallthru
    _
  %v14 = vld [vmem:[%s2] sm:$0xff]
  %v15 = vld [vmem:[%s2 + $0x8] sm:$0xff]
  %v16 = vld [vmem:[%s0] sm:$0xff]
  %18 = vset.pattern.permute.xlu0 0
  %19 = vperm.xlu0 %18, %v16
  %v20 = vpop.permute.xlu0 %19
  %v22 = vmul.f32 %v14, %v20
  %v23 = vmul.f32 %v15, %v20
  %v24 = vld [vmem:[%s1] sm:$0xff]
  %26 = vset.pattern.permute.xlu0 0
  %27 = vperm.xlu0 %26, %v24
  %v28 = vpop.permute.xlu0 %27
  %v30 = vadd.f32 %v22, %v28
  %v31 = vadd.f32 %v23, %v28
  %32 = vst [vmem:[%s3] sm:$0xff] %v30
  %33 = vst [vmem:[%s3 + $0x8] sm:$0xff] %v31
  // Predicated region
  $region14: #{_forward.1} parent=0 // pred_check
    _
  $region15: #{_forward.1} parent=0 // pred_check_branch
    %35 = sbr.rel (0) target = $region17
  $region16: #{_forward.1} parent=0 // pred_region
    _
  $region17: #{_forward.1} parent=0 // pred_fallthru
    _
  // Predicated region
  $region18: #{_forward.1} parent=0 // pred_check
    _
  $region19: #{_forward.1} parent=0 // pred_check_branch
    %37 = sbr.rel (0) target = $region21
  $region20: #{_forward.1} parent=0 // pred_region
    _
  $region21: #{_forward.1} parent=0 // pred_fallthru
    _

</llo_original>
